<compile_context>
chip_gen: v7x
topology: tpu7x:2x2x1
jax: 0.10.0
libtpu: 0.0.40
codegen_flags: <defaults>
</compile_context>

<pallas_src>
import functools

import jax
import jax.numpy as jnp
from jax import lax
from jax.experimental import pallas as pl
from jax.experimental.pallas import tpu as pltpu


def _celu(x):
    # CELU with alpha=1.0 (PyTorch default): max(0,x) + min(0, exp(x)-1).
    # exp(min(x,0)) never overflows; the explicit "-1" (instead of expm1) keeps
    # the transcendental on the EUP with a free VPU subtract and is within
    # float eps of expm1.
    return jnp.maximum(x, 0.0) + (jnp.exp(jnp.minimum(x, 0.0)) - 1.0)


def mlp_kernel(x_ref, w1_ref, w2_ref, w3_ref, w4_ref, o_ref):
    # x_ref : [TB, in_dim]  (batch-major, exactly the HBM layout)
    # w*_ref: PyTorch nn.Linear layout [out_features, in_features]
    # o_ref : [TB, dim_out] (batch-major, exactly the HBM layout)
    x = x_ref[...]

    # Layer 1: fold the input transpose into the contraction
    # (contract w1 dim 1 with x dim 1) -> feature-major [16, TB].
    h = _celu(
        lax.dot_general(w1_ref[...], x, (((1,), (1,)), ((), ())),
                        preferred_element_type=jnp.float32))
    # Layers 2-3: plain feature-major matmuls, batch stays on the lane axis.
    h = _celu(jnp.dot(w2_ref[...], h, preferred_element_type=jnp.float32))
    h = _celu(jnp.dot(w3_ref[...], h, preferred_element_type=jnp.float32))
    # Layer 4: fold the output transpose into the contraction
    # (contract h dim 0 with w4 dim 1) -> batch-major [TB, dim_out].
    y = lax.dot_general(h, w4_ref[...], (((0,), (1,)), ((), ())),
                        preferred_element_type=jnp.float32)
    o_ref[...] = y.astype(o_ref.dtype)


def _round_up(n, m):
    return ((n + m - 1) // m) * m


_MAX_TB = 8192  # rows per batch tile; ~3 MiB working set incl. double buffers


def _pick_tb(batch):
    padded = _round_up(batch, 128)
    if padded <= 128:
        return 128
    # At least 2 grid steps with an even count so v7x's two TensorCores both
    # get work; cap the tile at _MAX_TB to amortize the ~0.35 us/step grid
    # overhead. VMEM is not a constraint at any tile size we pick here.
    steps = max(2, 2 * pl.cdiv(padded, 2 * _MAX_TB))
    return _round_up(pl.cdiv(padded, steps), 128)


@functools.partial(jax.jit, static_argnames=("tb",))
def mlp_forward(x, w1, w2, w3, w4, *, tb=None):
    """Fused MLP forward.

    x : [batch, in_dim]  (in_dim = dim (+1 if time_varying))
    w1..w4 : PyTorch nn.Linear weight layout [out_features, in_features].
    Returns [batch, dim_out].
    """
    batch, in_dim = x.shape
    dim_out = w4.shape[0]

    if tb is None:
        tb = _pick_tb(batch)
    tb = _round_up(tb, 128)
    padded = _round_up(batch, tb)

    # Pad tail rows only when needed; zero rows are inert (no bias, CELU(0)=0).
    if padded == batch:
        x_in = x
    else:
        x_in = jnp.zeros((padded, in_dim), x.dtype).at[:batch, :].set(x)

    def weight_spec(w):
        # Full block + constant index map: DMA'd once, stays VMEM-resident.
        return pl.BlockSpec(w.shape, lambda i: (0, 0))

    y = pl.pallas_call(
        mlp_kernel,
        out_shape=jax.ShapeDtypeStruct((padded, dim_out), x.dtype),
        grid=(padded // tb,),
        in_specs=[
            pl.BlockSpec((tb, in_dim), lambda i: (i, 0)),
            weight_spec(w1),
            weight_spec(w2),
            weight_spec(w3),
            weight_spec(w4),
        ],
        out_specs=pl.BlockSpec((tb, dim_out), lambda i: (i, 0)),
        compiler_params=pltpu.CompilerParams(
            dimension_semantics=("parallel",),
        ),
    )(x_in, w1, w2, w3, w4)

    return y[:batch]


def init_params(key, dim, time_varying=False):
    """Deterministic weights, PyTorch nn.Linear layout (out_features, in_features)."""
    in_dim = dim + (1 if time_varying else 0)
    k1, k2, k3, k4 = jax.random.split(key, 4)

    def kaiming_uniform(k, fan_in, shape):
        bound = 1.0 / jnp.sqrt(fan_in)
        return jax.random.uniform(k, shape, jnp.float32, -bound, bound)

    w1 = kaiming_uniform(k1, in_dim, (16, in_dim))
    w2 = kaiming_uniform(k2, 16, (32, 16))
    w3 = kaiming_uniform(k3, 32, (16, 32))
    w4 = kaiming_uniform(k4, 16, (dim, 16))
    return w1, w2, w3, w4


def _celu_ref(x):
    return jnp.maximum(x, 0.0) + jnp.minimum(0.0, jnp.expm1(x))


def mlp_reference(x, w1, w2, w3, w4):
    h = _celu_ref(x @ w1.T)
    h = _celu_ref(h @ w2.T)
    h = _celu_ref(h @ w3.T)
    return h @ w4.T


if __name__ == "__main__":
    key = jax.random.PRNGKey(0)
    dim = 8
    time_varying = False
    in_dim = dim + (1 if time_varying else 0)

    kx, kp = jax.random.split(key)
    w1, w2, w3, w4 = init_params(kp, dim, time_varying)

    # Small batch: single 128-row tile (tail rows zero-padded inside jit).
    x_small = jax.random.normal(kx, (8, in_dim), jnp.float32)
    out_small = jax.block_until_ready(mlp_forward(x_small, w1, w2, w3, w4))
    ref_small = mlp_reference(x_small, w1, w2, w3, w4)
    assert out_small.shape == (8, dim)
    assert jnp.allclose(out_small, ref_small, atol=1e-5, rtol=1e-5), "mismatch (small)"

    # Multi-tile: batch not divisible by the tile -> exercises the batch grid,
    # VMEM-resident weights, and tail-row padding.
    x_big = jax.random.normal(kx, (300, in_dim), jnp.float32)
    out_big = jax.block_until_ready(mlp_forward(x_big, w1, w2, w3, w4, tb=128))
    ref_big = mlp_reference(x_big, w1, w2, w3, w4)
    assert out_big.shape == (300, dim)
    assert jnp.allclose(out_big, ref_big, atol=1e-5, rtol=1e-5), "mismatch (tiled)"

    print("KERNEL_OK")
</pallas_src>

<mosaic_0001>
module attributes {stable_mosaic.version = 11 : i64} {
  func.func @mlp_kernel(%arg0: i32, %arg1: memref<128x8xf32, #tpu.memory_space<vmem>>, %arg2: memref<16x8xf32, #tpu.memory_space<vmem>>, %arg3: memref<32x16xf32, #tpu.memory_space<vmem>>, %arg4: memref<16x32xf32, #tpu.memory_space<vmem>>, %arg5: memref<8x16xf32, #tpu.memory_space<vmem>>, %arg6: memref<128x8xf32, #tpu.memory_space<vmem>>) attributes {dimension_semantics = [#tpu.dimension_semantics<parallel>], iteration_bounds = array<i64: 1>, scalar_prefetch = 0 : i64, scratch_operands = 0 : i64, tpu.core_type = #tpu.core_type<tc>, window_params = [{transform_indices = @transform_0, window_bounds = array<i64: 128, 8>}, {pipeline_mode = #tpu.pipeline_mode<synchronous>, transform_indices = @transform_1, window_bounds = array<i64: 16, 8>}, {pipeline_mode = #tpu.pipeline_mode<synchronous>, transform_indices = @transform_2, window_bounds = array<i64: 32, 16>}, {pipeline_mode = #tpu.pipeline_mode<synchronous>, transform_indices = @transform_3, window_bounds = array<i64: 16, 32>}, {pipeline_mode = #tpu.pipeline_mode<synchronous>, transform_indices = @transform_4, window_bounds = array<i64: 8, 16>}, {transform_indices = @transform_5, window_bounds = array<i64: 128, 8>}]} {
    %c0 = arith.constant 0 : index
    %c0_0 = arith.constant 0 : index
    %0 = vector.load %arg1[%c0, %c0_0] : memref<128x8xf32, #tpu.memory_space<vmem>>, vector<128x8xf32>
    %c0_1 = arith.constant 0 : index
    %c0_2 = arith.constant 0 : index
    %1 = vector.load %arg2[%c0_1, %c0_2] : memref<16x8xf32, #tpu.memory_space<vmem>>, vector<16x8xf32>
    %cst = arith.constant dense<0.000000e+00> : vector<16x128xf32>
    %2 = tpu.matmul %1, %0, %cst {dimension_numbers = #tpu.dot_dimension_numbers<[1], [1], [0], [0], [0, 0, 1, 0], [], []>} : vector<16x8xf32>, vector<128x8xf32>, vector<16x128xf32> -> vector<16x128xf32>
    %cst_3 = arith.constant 0.000000e+00 : f32
    %3 = vector.broadcast %cst_3 : f32 to vector<16x128xf32>
    %4 = arith.maximumf %2, %3 : vector<16x128xf32>
    %cst_4 = arith.constant 0.000000e+00 : f32
    %5 = vector.broadcast %cst_4 : f32 to vector<16x128xf32>
    %6 = arith.minimumf %2, %5 : vector<16x128xf32>
    %7 = math.exp %6 : vector<16x128xf32>
    %cst_5 = arith.constant 1.000000e+00 : f32
    %8 = vector.broadcast %cst_5 : f32 to vector<16x128xf32>
    %9 = arith.subf %7, %8 : vector<16x128xf32>
    %10 = arith.addf %4, %9 : vector<16x128xf32>
    %c0_6 = arith.constant 0 : index
    %c0_7 = arith.constant 0 : index
    %11 = vector.load %arg3[%c0_6, %c0_7] : memref<32x16xf32, #tpu.memory_space<vmem>>, vector<32x16xf32>
    %cst_8 = arith.constant dense<0.000000e+00> : vector<32x128xf32>
    %12 = tpu.matmul %11, %10, %cst_8 {dimension_numbers = #tpu.dot_dimension_numbers<[1], [0], [0], [1], [0, 0, 1, 1], [], []>} : vector<32x16xf32>, vector<16x128xf32>, vector<32x128xf32> -> vector<32x128xf32>
    %cst_9 = arith.constant 0.000000e+00 : f32
    %13 = vector.broadcast %cst_9 : f32 to vector<32x128xf32>
    %14 = arith.maximumf %12, %13 : vector<32x128xf32>
    %cst_10 = arith.constant 0.000000e+00 : f32
    %15 = vector.broadcast %cst_10 : f32 to vector<32x128xf32>
    %16 = arith.minimumf %12, %15 : vector<32x128xf32>
    %17 = math.exp %16 : vector<32x128xf32>
    %cst_11 = arith.constant 1.000000e+00 : f32
    %18 = vector.broadcast %cst_11 : f32 to vector<32x128xf32>
    %19 = arith.subf %17, %18 : vector<32x128xf32>
    %20 = arith.addf %14, %19 : vector<32x128xf32>
    %c0_12 = arith.constant 0 : index
    %c0_13 = arith.constant 0 : index
    %21 = vector.load %arg4[%c0_12, %c0_13] : memref<16x32xf32, #tpu.memory_space<vmem>>, vector<16x32xf32>
    %cst_14 = arith.constant dense<0.000000e+00> : vector<16x128xf32>
    %22 = tpu.matmul %21, %20, %cst_14 {dimension_numbers = #tpu.dot_dimension_numbers<[1], [0], [0], [1], [0, 0, 1, 1], [], []>} : vector<16x32xf32>, vector<32x128xf32>, vector<16x128xf32> -> vector<16x128xf32>
    %cst_15 = arith.constant 0.000000e+00 : f32
    %23 = vector.broadcast %cst_15 : f32 to vector<16x128xf32>
    %24 = arith.maximumf %22, %23 : vector<16x128xf32>
    %cst_16 = arith.constant 0.000000e+00 : f32
    %25 = vector.broadcast %cst_16 : f32 to vector<16x128xf32>
    %26 = arith.minimumf %22, %25 : vector<16x128xf32>
    %27 = math.exp %26 : vector<16x128xf32>
    %cst_17 = arith.constant 1.000000e+00 : f32
    %28 = vector.broadcast %cst_17 : f32 to vector<16x128xf32>
    %29 = arith.subf %27, %28 : vector<16x128xf32>
    %30 = arith.addf %24, %29 : vector<16x128xf32>
    %c0_18 = arith.constant 0 : index
    %c0_19 = arith.constant 0 : index
    %31 = vector.load %arg5[%c0_18, %c0_19] : memref<8x16xf32, #tpu.memory_space<vmem>>, vector<8x16xf32>
    %cst_20 = arith.constant dense<0.000000e+00> : vector<128x8xf32>
    %32 = tpu.matmul %30, %31, %cst_20 {dimension_numbers = #tpu.dot_dimension_numbers<[0], [1], [1], [0], [0, 1, 1, 0], [], []>} : vector<16x128xf32>, vector<8x16xf32>, vector<128x8xf32> -> vector<128x8xf32>
    %c0_21 = arith.constant 0 : index
    %c0_22 = arith.constant 0 : index
    %33 = vector.load %arg6[%c0_21, %c0_22] : memref<128x8xf32, #tpu.memory_space<vmem>>, vector<128x8xf32>
    tpu.vector_store %arg6[%c0_21, %c0_22], %32 {strides = array<i32>} : memref<128x8xf32, #tpu.memory_space<vmem>>, vector<128x8xf32>,
    return
  }
  func.func @transform_0(%arg0: i32) -> (i32, i32) {
    %c0_i32 = arith.constant 0 : i32
    %c0_i32_0 = arith.constant 0 : i32
    return %arg0, %c0_i32 : i32, i32
  }
  func.func @transform_1(%arg0: i32) -> (i32, i32) {
    %c0_i32 = arith.constant 0 : i32
    %c0_i32_0 = arith.constant 0 : i32
    %c0_i32_1 = arith.constant 0 : i32
    return %c0_i32, %c0_i32_0 : i32, i32
  }
  func.func @transform_2(%arg0: i32) -> (i32, i32) {
    %c0_i32 = arith.constant 0 : i32
    %c0_i32_0 = arith.constant 0 : i32
    %c0_i32_1 = arith.constant 0 : i32
    return %c0_i32, %c0_i32_0 : i32, i32
  }
  func.func @transform_3(%arg0: i32) -> (i32, i32) {
    %c0_i32 = arith.constant 0 : i32
    %c0_i32_0 = arith.constant 0 : i32
    %c0_i32_1 = arith.constant 0 : i32
    return %c0_i32, %c0_i32_0 : i32, i32
  }
  func.func @transform_4(%arg0: i32) -> (i32, i32) {
    %c0_i32 = arith.constant 0 : i32
    %c0_i32_0 = arith.constant 0 : i32
    %c0_i32_1 = arith.constant 0 : i32
    return %c0_i32, %c0_i32_0 : i32, i32
  }
  func.func @transform_5(%arg0: i32) -> (i32, i32) {
    %c0_i32 = arith.constant 0 : i32
    %c0_i32_0 = arith.constant 0 : i32
    return %arg0, %c0_i32 : i32, i32
  }
}

</mosaic_0001>

<llo_original>
// kernel: mlp_forward.1
$region0: #{mlp_forward.1}
  #allocation0 [shape = 'u32[]', space=smem, size = 0x4, offset = 0x4, fixed_abs, tag = 'smem constant byte address 0x4 - core index']
  #allocation1 [shape = 'u32[144,128]{1,0:T(1,128)}', space=vmem, size = 0x12000, scoped, tag = 'internal scratch']
  %s0 = inlined_call_operand.vmem [shape: f32[128,8], index: 0, kind: input, shape index: {}]
  %s1 = inlined_call_operand.vmem [shape: f32[16,8], index: 1, kind: input, shape index: {}]
  %s2 = inlined_call_operand.vmem [shape: f32[32,16], index: 2, kind: input, shape index: {}]
  %s3 = inlined_call_operand.vmem [shape: f32[16,32], index: 3, kind: input, shape index: {}]
  %s4 = inlined_call_operand.vmem [shape: f32[8,16], index: 4, kind: input, shape index: {}]
  %s5 = inlined_call_operand.vmem [shape: f32[128,8], index: 5, kind: output, shape index: {}]
  %s6 = sld [smem:[#allocation0]]
  $region30: #{mlp_forward.1} parent=0
    _
  %s8 = ssub.s32 1, %s6
  %s9 = scalar_select 0, %s8, %s6
  // Predicated region
  $region2: #{mlp_forward.1} parent=0 // pred_check
    _
  $region3: #{mlp_forward.1} parent=0 // pred_check_branch
    %11 = sbr.rel (0) target = $region5
  $region4: #{mlp_forward.1} parent=0 // pred_region
    _
  $region5: #{mlp_forward.1} parent=0 // pred_fallthru
    _
  // Predicated region
  $region6: #{mlp_forward.1} parent=0 // pred_check
    _
  $region7: #{mlp_forward.1} parent=0 // pred_check_branch
    %13 = sbr.rel (0) target = $region9
  $region8: #{mlp_forward.1} parent=0 // pred_region
    _
  $region9: #{mlp_forward.1} parent=0 // pred_fallthru
    _
  // Predicated region
  $region10: #{mlp_forward.1} parent=0 // pred_check
    _
  $region11: #{mlp_forward.1} parent=0 // pred_check_branch
    %15 = sbr.rel (0) target = $region13
  $region12: #{mlp_forward.1} parent=0 // pred_region
    _
  $region13: #{mlp_forward.1} parent=0 // pred_fallthru
    _
  // Predicated region
  $region14: #{mlp_forward.1} parent=0 // pred_check
    _
  $region15: #{mlp_forward.1} parent=0 // pred_check_branch
    %17 = sbr.rel (0) target = $region17
  $region16: #{mlp_forward.1} parent=0 // pred_region
    _
  $region17: #{mlp_forward.1} parent=0 // pred_fallthru
    _
  // Predicated region
  $region18: #{mlp_forward.1} parent=0 // pred_check
    _
  $region19: #{mlp_forward.1} parent=0 // pred_check_branch
    %19 = sbr.rel (0) target = $region21
  $region20: #{mlp_forward.1} parent=0 // pred_region
    _
  $region21: #{mlp_forward.1} parent=0 // pred_fallthru
    _
  %v20 = vld [vmem:[%s0] sm:$0xff]
  %v21 = vld [vmem:[%s0 + $0x8] sm:$0xff]
  %v22 = vld [vmem:[%s0 + $0x10] sm:$0xff]
  %v23 = vld [vmem:[%s0 + $0x18] sm:$0xff]
  %v24 = vld [vmem:[%s0 + $0x20] sm:$0xff]
  %v25 = vld [vmem:[%s0 + $0x28] sm:$0xff]
  %v26 = vld [vmem:[%s0 + $0x30] sm:$0xff]
  %v27 = vld [vmem:[%s0 + $0x38] sm:$0xff]
  %v28 = vld [vmem:[%s0 + $0x40] sm:$0xff]
  %v29 = vld [vmem:[%s0 + $0x48] sm:$0xff]
  %v30 = vld [vmem:[%s0 + $0x50] sm:$0xff]
  %v31 = vld [vmem:[%s0 + $0x58] sm:$0xff]
  %v32 = vld [vmem:[%s0 + $0x60] sm:$0xff]
  %v33 = vld [vmem:[%s0 + $0x68] sm:$0xff]
  %v34 = vld [vmem:[%s0 + $0x70] sm:$0xff]
  %v35 = vld [vmem:[%s0 + $0x78] sm:$0xff]
  %v36 = vld [vmem:[%s1] sm:$0xff]
  %v37 = vld [vmem:[%s1 + $0x8] sm:$0xff]
  %vm38 = vcmask 64512
  %v40 = vsel %vm38, %v36, 0
  %v43 = vsel %vm38, %v37, 0
  %v46 = vsel %vm38, %v20, 0
  %v49 = vsel %vm38, %v21, 0
  %v52 = vsel %vm38, %v22, 0
  %v55 = vsel %vm38, %v23, 0
  %v58 = vsel %vm38, %v24, 0
  %v61 = vsel %vm38, %v25, 0
  %v64 = vsel %vm38, %v26, 0
  %v67 = vsel %vm38, %v27, 0
  %v70 = vsel %vm38, %v28, 0
  %v73 = vsel %vm38, %v29, 0
  %v76 = vsel %vm38, %v30, 0
  %v79 = vsel %vm38, %v31, 0
  %v82 = vsel %vm38, %v32, 0
  %v85 = vsel %vm38, %v33, 0
  %v88 = vsel %vm38, %v34, 0
  %v91 = vsel %vm38, %v35, 0
  %93 = vmatprep.subr.mxu0 0.0
  %94 = vmatpush1.xpose.msra.mxu0 %v46
  %95 = vmatprep.subr.mxu0 0.0
  %96 = vmatpush1.xpose.msra.mxu0 %v49
  %97 = vmatprep.subr.mxu0 0.0
  %98 = vmatpush1.xpose.msra.mxu0 %v52
  %99 = vmatprep.subr.mxu0 0.0
  %100 = vmatpush1.xpose.msra.mxu0 %v55
  %101 = vmatprep.subr.mxu0 0.0
  %102 = vmatpush1.xpose.msra.mxu0 %v58
  %103 = vmatprep.subr.mxu0 0.0
  %104 = vmatpush1.xpose.msra.mxu0 %v61
  %105 = vmatprep.subr.mxu0 0.0
  %106 = vmatpush1.xpose.msra.mxu0 %v64
  %107 = vmatprep.subr.mxu0 0.0
  %108 = vmatpush1.xpose.msra.mxu0 %v67
  %109 = vmatprep.subr.mxu0 0.0
  %110 = vmatpush1.xpose.msra.mxu0 %v70
  %111 = vmatprep.subr.mxu0 0.0
  %112 = vmatpush1.xpose.msra.mxu0 %v73
  %113 = vmatprep.subr.mxu0 0.0
  %114 = vmatpush1.xpose.msra.mxu0 %v76
  %115 = vmatprep.subr.mxu0 0.0
  %116 = vmatpush1.xpose.msra.mxu0 %v79
  %117 = vmatprep.subr.mxu0 0.0
  %118 = vmatpush1.xpose.msra.mxu0 %v82
  %119 = vmatprep.subr.mxu0 0.0
  %120 = vmatpush1.xpose.msra.mxu0 %v85
  %121 = vmatprep.subr.mxu0 0.0
  %122 = vmatpush1.xpose.msra.mxu0 %v88
  %123 = vmatprep.subr.mxu0 0.0
  %124 = vmatpush1.xpose.msra.mxu0 %v91
  %125 = vmatprep.subr.mxu0 0.0
  %126 = vmatpush1.xpose.msra.mxu0 0.0
  %127 = vmatprep.subr.mxu0 0.0
  %128 = vmatpush1.xpose.msra.mxu0 0.0
  %129 = vmatprep.subr.mxu0 0.0
  %130 = vmatpush1.xpose.msra.mxu0 0.0
  %131 = vmatprep.subr.mxu0 0.0
  %132 = vmatpush1.xpose.msra.mxu0 0.0
  %133 = vmatprep.subr.mxu0 0.0
  %134 = vmatpush1.xpose.msra.mxu0 0.0
  %135 = vmatprep.subr.mxu0 0.0
  %136 = vmatpush1.xpose.msra.mxu0 0.0
  %137 = vmatprep.subr.mxu0 0.0
  %138 = vmatpush1.xpose.msra.mxu0 0.0
  %139 = vmatprep.subr.mxu0 0.0
  %140 = vmatpush1.xpose.msra.mxu0 0.0
  %141 = vmatprep.subr.mxu0 0.0
  %142 = vmatpush1.xpose.msra.mxu0 0.0
  %143 = vmatprep.subr.mxu0 0.0
  %144 = vmatpush1.xpose.msra.mxu0 0.0
  %145 = vmatprep.subr.mxu0 0.0
  %146 = vmatpush1.xpose.msra.mxu0 0.0
  %147 = vmatprep.subr.mxu0 0.0
  %148 = vmatpush1.xpose.msra.mxu0 0.0
  %149 = vmatprep.subr.mxu0 0.0
  %150 = vmatpush1.xpose.msra.mxu0 0.0
  %151 = vmatprep.subr.mxu0 0.0
  %152 = vmatpush1.xpose.msra.mxu0 0.0
  %153 = vmatprep.subr.mxu0 0.0
  %154 = vmatpush1.xpose.msra.mxu0 0.0
  %155 = vmatprep.subr.mxu0 0.0
  %156 = vmatpush1.xpose.msra.mxu0 0.0
  %157 = vmatprep.mubr.f32.mxu0 0.0
  %158 = vmatmul.mubr.f32.gmra.mrb[0].mxu0 %v40
  %v159 = vpop.f32.mrb[0].mxu0
  %v160 = vadd.f32 0.0, %v159
  %v161 = vpop.f32.mrb[0].mxu0
  %162 = vmatprep.mubr.f32.mxu0 0.0
  %163 = vmatmul.mubr.f32.gmra.mrb[0].mxu0 %v43
  %v164 = vpop.f32.mrb[0].mxu0
  %v165 = vadd.f32 0.0, %v164
  %v166 = vpop.f32.mrb[0].mxu0
  %167 = vdwg.mxu0
  %v168 = vmax.f32 %v160, 0.0
  %v169 = vmax.f32 %v165, 0.0
  %v170 = vmin.f32 %v160, 0.0
  %v171 = vmin.f32 %v165, 0.0
  %v172 = vmul.f32 %v170, 1.442695
  %v173 = vpow.pop %v172
  %v174 = vmul.f32 %v171, 1.442695
  %v175 = vpow.pop %v174
  %v176 = vsub.f32 %v173, 1.0
  %v177 = vsub.f32 %v175, 1.0
  %v178 = vadd.f32 %v168, %v176
  %v179 = vadd.f32 %v169, %v177
  %v180 = vld [vmem:[%s2] sm:$0xff]
  %v181 = vld [vmem:[%s2 + $0x8] sm:$0xff]
  %v182 = vld [vmem:[%s2 + $0x10] sm:$0xff]
  %v183 = vld [vmem:[%s2 + $0x18] sm:$0xff]
  %vm184 = vcmask 130048
  %v186 = vsel %vm184, %v180, 0
  %v189 = vsel %vm184, %v181, 0
  %v192 = vsel %vm184, %v182, 0
  %v195 = vsel %vm184, %v183, 0
  %197 = vmatprep.subr.mxu0 0.0
  %198 = vmatpush1.msra.mxu0 %v178
  %199 = vmatprep.subr.mxu0 0.0
  %200 = vmatpush1.msra.mxu0 %v179
  %201 = vmatprep.subr.mxu0 0.0
  %202 = vmatpush1.msra.mxu0 0.0
  %203 = vmatprep.subr.mxu0 0.0
  %204 = vmatpush1.msra.mxu0 0.0
  %205 = vmatprep.subr.mxu0 0.0
  %206 = vmatpush1.msra.mxu0 0.0
  %207 = vmatprep.subr.mxu0 0.0
  %208 = vmatpush1.msra.mxu0 0.0
  %209 = vmatprep.subr.mxu0 0.0
  %210 = vmatpush1.msra.mxu0 0.0
  %211 = vmatprep.subr.mxu0 0.0
  %212 = vmatpush1.msra.mxu0 0.0
  %213 = vmatprep.subr.mxu0 0.0
  %214 = vmatpush1.msra.mxu0 0.0
  %215 = vmatprep.subr.mxu0 0.0
  %216 = vmatpush1.msra.mxu0 0.0
  %217 = vmatprep.subr.mxu0 0.0
  %218 = vmatpush1.msra.mxu0 0.0
  %219 = vmatprep.subr.mxu0 0.0
  %220 = vmatpush1.msra.mxu0 0.0
  %221 = vmatprep.subr.mxu0 0.0
  %222 = vmatpush1.msra.mxu0 0.0
  %223 = vmatprep.subr.mxu0 0.0
  %224 = vmatpush1.msra.mxu0 0.0
  %225 = vmatprep.subr.mxu0 0.0
  %226 = vmatpush1.msra.mxu0 0.0
  %227 = vmatprep.subr.mxu0 0.0
  %228 = vmatpush1.msra.mxu0 0.0
  %229 = vmatprep.subr.mxu0 0.0
  %230 = vmatpush1.msra.mxu0 0.0
  %231 = vmatprep.subr.mxu0 0.0
  %232 = vmatpush1.msra.mxu0 0.0
  %233 = vmatprep.subr.mxu0 0.0
  %234 = vmatpush1.msra.mxu0 0.0
  %235 = vmatprep.subr.mxu0 0.0
  %236 = vmatpush1.msra.mxu0 0.0
  %237 = vmatprep.subr.mxu0 0.0
  %238 = vmatpush1.msra.mxu0 0.0
  %239 = vmatprep.subr.mxu0 0.0
  %240 = vmatpush1.msra.mxu0 0.0
  %241 = vmatprep.subr.mxu0 0.0
  %242 = vmatpush1.msra.mxu0 0.0
  %243 = vmatprep.subr.mxu0 0.0
  %244 = vmatpush1.msra.mxu0 0.0
  %245 = vmatprep.subr.mxu0 0.0
  %246 = vmatpush1.msra.mxu0 0.0
  %247 = vmatprep.subr.mxu0 0.0
  %248 = vmatpush1.msra.mxu0 0.0
  %249 = vmatprep.subr.mxu0 0.0
  %250 = vmatpush1.msra.mxu0 0.0
  %251 = vmatprep.subr.mxu0 0.0
  %252 = vmatpush1.msra.mxu0 0.0
  %253 = vmatprep.subr.mxu0 0.0
  %254 = vmatpush1.msra.mxu0 0.0
  %255 = vmatprep.subr.mxu0 0.0
  %256 = vmatpush1.msra.mxu0 0.0
  %257 = vmatprep.subr.mxu0 0.0
  %258 = vmatpush1.msra.mxu0 0.0
  %259 = vmatprep.subr.mxu0 0.0
  %260 = vmatpush1.msra.mxu0 0.0
  %261 = vmatprep.mubr.f32.mxu0 0.0
  %262 = vmatmul.mubr.f32.gmra.mrb[0].mxu0 %v186
  %v263 = vpop.f32.mrb[0].mxu0
  %v264 = vadd.f32 0.0, %v263
  %v265 = vpop.f32.mrb[0].mxu0
  %266 = vmatprep.mubr.f32.mxu0 0.0
  %267 = vmatmul.mubr.f32.gmra.mrb[0].mxu0 %v189
  %v268 = vpop.f32.mrb[0].mxu0
  %v269 = vadd.f32 0.0, %v268
  %v270 = vpop.f32.mrb[0].mxu0
  %271 = vmatprep.mubr.f32.mxu0 0.0
  %272 = vmatmul.mubr.f32.gmra.mrb[0].mxu0 %v192
  %v273 = vpop.f32.mrb[0].mxu0
  %v274 = vadd.f32 0.0, %v273
  %v275 = vpop.f32.mrb[0].mxu0
  %276 = vmatprep.mubr.f32.mxu0 0.0
  %277 = vmatmul.mubr.f32.gmra.mrb[0].mxu0 %v195
  %v278 = vpop.f32.mrb[0].mxu0
  %v279 = vadd.f32 0.0, %v278
  %v280 = vpop.f32.mrb[0].mxu0
  %281 = vdwg.mxu0
  %v282 = vmax.f32 %v264, 0.0
  %v283 = vmax.f32 %v269, 0.0
  %v284 = vmax.f32 %v274, 0.0
  %v285 = vmax.f32 %v279, 0.0
  %v286 = vmin.f32 %v264, 0.0
  %v287 = vmin.f32 %v269, 0.0
  %v288 = vmin.f32 %v274, 0.0
  %v289 = vmin.f32 %v279, 0.0
  %v290 = vmul.f32 %v286, 1.442695
  %v291 = vpow.pop %v290
  %v292 = vmul.f32 %v287, 1.442695
  %v293 = vpow.pop %v292
  %v294 = vmul.f32 %v288, 1.442695
  %v295 = vpow.pop %v294
  %v296 = vmul.f32 %v289, 1.442695
  %v297 = vpow.pop %v296
  %v298 = vsub.f32 %v291, 1.0
  %v299 = vsub.f32 %v293, 1.0
  %v300 = vsub.f32 %v295, 1.0
  %v301 = vsub.f32 %v297, 1.0
  %v302 = vadd.f32 %v282, %v298
  %v303 = vadd.f32 %v283, %v299
  %v304 = vadd.f32 %v284, %v300
  %v305 = vadd.f32 %v285, %v301
  %v306 = vld [vmem:[%s3] sm:$0xff]
  %v307 = vld [vmem:[%s3 + $0x8] sm:$0xff]
  %vm308 = vcmask 261120
  %v310 = vsel %vm308, %v306, 0
  %v313 = vsel %vm308, %v307, 0
  %315 = vmatprep.subr.mxu0 0.0
  %316 = vmatpush1.msra.mxu0 %v302
  %317 = vmatprep.subr.mxu0 0.0
  %318 = vmatpush1.msra.mxu0 %v303
  %319 = vmatprep.subr.mxu0 0.0
  %320 = vmatpush1.msra.mxu0 %v304
  %321 = vmatprep.subr.mxu0 0.0
  %322 = vmatpush1.msra.mxu0 %v305
  %323 = vmatprep.subr.mxu0 0.0
  %324 = vmatpush1.msra.mxu0 0.0
  %325 = vmatprep.subr.mxu0 0.0
  %326 = vmatpush1.msra.mxu0 0.0
  %327 = vmatprep.subr.mxu0 0.0
  %328 = vmatpush1.msra.mxu0 0.0
  %329 = vmatprep.subr.mxu0 0.0
  %330 = vmatpush1.msra.mxu0 0.0
  %331 = vmatprep.subr.mxu0 0.0
  %332 = vmatpush1.msra.mxu0 0.0
  %333 = vmatprep.subr.mxu0 0.0
  %334 = vmatpush1.msra.mxu0 0.0
  %335 = vmatprep.subr.mxu0 0.0
  %336 = vmatpush1.msra.mxu0 0.0
  %337 = vmatprep.subr.mxu0 0.0
  %338 = vmatpush1.msra.mxu0 0.0
  %339 = vmatprep.subr.mxu0 0.0
  %340 = vmatpush1.msra.mxu0 0.0
  %341 = vmatprep.subr.mxu0 0.0
  %342 = vmatpush1.msra.mxu0 0.0
  %343 = vmatprep.subr.mxu0 0.0
  %344 = vmatpush1.msra.mxu0 0.0
  %345 = vmatprep.subr.mxu0 0.0
  %346 = vmatpush1.msra.mxu0 0.0
  %347 = vmatprep.subr.mxu0 0.0
  %348 = vmatpush1.msra.mxu0 0.0
  %349 = vmatprep.subr.mxu0 0.0
  %350 = vmatpush1.msra.mxu0 0.0
  %351 = vmatprep.subr.mxu0 0.0
  %352 = vmatpush1.msra.mxu0 0.0
  %353 = vmatprep.subr.mxu0 0.0
  %354 = vmatpush1.msra.mxu0 0.0
  %355 = vmatprep.subr.mxu0 0.0
  %356 = vmatpush1.msra.mxu0 0.0
  %357 = vmatprep.subr.mxu0 0.0
  %358 = vmatpush1.msra.mxu0 0.0
  %359 = vmatprep.subr.mxu0 0.0
  %360 = vmatpush1.msra.mxu0 0.0
  %361 = vmatprep.subr.mxu0 0.0
  %362 = vmatpush1.msra.mxu0 0.0
  %363 = vmatprep.subr.mxu0 0.0
  %364 = vmatpush1.msra.mxu0 0.0
  %365 = vmatprep.subr.mxu0 0.0
  %366 = vmatpush1.msra.mxu0 0.0
  %367 = vmatprep.subr.mxu0 0.0
  %368 = vmatpush1.msra.mxu0 0.0
  %369 = vmatprep.subr.mxu0 0.0
  %370 = vmatpush1.msra.mxu0 0.0
  %371 = vmatprep.subr.mxu0 0.0
  %372 = vmatpush1.msra.mxu0 0.0
  %373 = vmatprep.subr.mxu0 0.0
  %374 = vmatpush1.msra.mxu0 0.0
  %375 = vmatprep.subr.mxu0 0.0
  %376 = vmatpush1.msra.mxu0 0.0
  %377 = vmatprep.subr.mxu0 0.0
  %378 = vmatpush1.msra.mxu0 0.0
  %379 = vmatprep.mubr.f32.mxu0 0.0
  %380 = vmatmul.mubr.f32.gmra.mrb[0].mxu0 %v310
  %v381 = vpop.f32.mrb[0].mxu0
  %v382 = vadd.f32 0.0, %v381
  %v383 = vpop.f32.mrb[0].mxu0
  %384 = vmatprep.mubr.f32.mxu0 0.0
  %385 = vmatmul.mubr.f32.gmra.mrb[0].mxu0 %v313
  %v386 = vpop.f32.mrb[0].mxu0
  %v387 = vadd.f32 0.0, %v386
  %v388 = vpop.f32.mrb[0].mxu0
  %389 = vdwg.mxu0
  %v390 = vmax.f32 %v382, 0.0
  %v391 = vmax.f32 %v387, 0.0
  %v392 = vmin.f32 %v382, 0.0
  %v393 = vmin.f32 %v387, 0.0
  %v394 = vmul.f32 %v392, 1.442695
  %v395 = vpow.pop %v394
  %v396 = vmul.f32 %v393, 1.442695
  %v397 = vpow.pop %v396
  %v398 = vsub.f32 %v395, 1.0
  %v399 = vsub.f32 %v397, 1.0
  %v400 = vadd.f32 %v390, %v398
  %v401 = vadd.f32 %v391, %v399
  %v402 = vld [vmem:[%s4] sm:$0xff]
  %403 = vxpose.xlu0.b32.start [1/16] %v400, 128
  %404 = vxpose.xlu0.b32.cont [2/16] %v401, 128
  %405 = vxpose.xlu0.b32.cont [3/16] 0.0, 128
  %406 = vxpose.xlu0.b32.cont [4/16] 0.0, 128
  %407 = vxpose.xlu0.b32.cont [5/16] 0.0, 128
  %408 = vxpose.xlu0.b32.cont [6/16] 0.0, 128
  %409 = vxpose.xlu0.b32.cont [7/16] 0.0, 128
  %410 = vxpose.xlu0.b32.cont [8/16] 0.0, 128
  %411 = vxpose.xlu0.b32.cont [9/16] 0.0, 128
  %412 = vxpose.xlu0.b32.cont [10/16] 0.0, 128
  %413 = vxpose.xlu0.b32.cont [11/16] 0.0, 128
  %414 = vxpose.xlu0.b32.cont [12/16] 0.0, 128
  %415 = vxpose.xlu0.b32.cont [13/16] 0.0, 128
  %416 = vxpose.xlu0.b32.cont [14/16] 0.0, 128
  %417 = vxpose.xlu0.b32.cont [15/16] 0.0, 128
  %418 = vxpose.xlu0.b32.end [16/16] 0.0, 128
  %v419 = vpop.trf.xlu0
  %v420 = vpop.trf.xlu0
  %v421 = vpop.trf.xlu0
  %v422 = vpop.trf.xlu0
  %v423 = vpop.trf.xlu0
  %v424 = vpop.trf.xlu0
  %v425 = vpop.trf.xlu0
  %v426 = vpop.trf.xlu0
  %v427 = vpop.trf.xlu0
  %v428 = vpop.trf.xlu0
  %v429 = vpop.trf.xlu0
  %v430 = vpop.trf.xlu0
  %v431 = vpop.trf.xlu0
  %v432 = vpop.trf.xlu0
  %v433 = vpop.trf.xlu0
  %v434 = vpop.trf.xlu0
  %v436 = vsel %vm184, %v419, 0
  %v439 = vsel %vm184, %v420, 0
  %v442 = vsel %vm184, %v421, 0
  %v445 = vsel %vm184, %v422, 0
  %v448 = vsel %vm184, %v423, 0
  %v451 = vsel %vm184, %v424, 0
  %v454 = vsel %vm184, %v425, 0
  %v457 = vsel %vm184, %v426, 0
  %v460 = vsel %vm184, %v427, 0
  %v463 = vsel %vm184, %v428, 0
  %v466 = vsel %vm184, %v429, 0
  %v469 = vsel %vm184, %v430, 0
  %v472 = vsel %vm184, %v431, 0
  %v475 = vsel %vm184, %v432, 0
  %v478 = vsel %vm184, %v433, 0
  %v481 = vsel %vm184, %v434, 0
  %v484 = vsel %vm184, %v402, 0
  %486 = vmatprep.subr.mxu0 0.0
  %487 = vmatpush1.xpose.msra.mxu0 %v484
  %488 = vmatprep.subr.mxu0 0.0
  %489 = vmatpush1.xpose.msra.mxu0 0.0
  %490 = vmatprep.subr.mxu0 0.0
  %491 = vmatpush1.xpose.msra.mxu0 0.0
  %492 = vmatprep.subr.mxu0 0.0
  %493 = vmatpush1.xpose.msra.mxu0 0.0
  %494 = vmatprep.subr.mxu0 0.0
  %495 = vmatpush1.xpose.msra.mxu0 0.0
  %496 = vmatprep.subr.mxu0 0.0
  %497 = vmatpush1.xpose.msra.mxu0 0.0
  %498 = vmatprep.subr.mxu0 0.0
  %499 = vmatpush1.xpose.msra.mxu0 0.0
  %500 = vmatprep.subr.mxu0 0.0
  %501 = vmatpush1.xpose.msra.mxu0 0.0
  %502 = vmatprep.subr.mxu0 0.0
  %503 = vmatpush1.xpose.msra.mxu0 0.0
  %504 = vmatprep.subr.mxu0 0.0
  %505 = vmatpush1.xpose.msra.mxu0 0.0
  %506 = vmatprep.subr.mxu0 0.0
  %507 = vmatpush1.xpose.msra.mxu0 0.0
  %508 = vmatprep.subr.mxu0 0.0
  %509 = vmatpush1.xpose.msra.mxu0 0.0
  %510 = vmatprep.subr.mxu0 0.0
  %511 = vmatpush1.xpose.msra.mxu0 0.0
  %512 = vmatprep.subr.mxu0 0.0
  %513 = vmatpush1.xpose.msra.mxu0 0.0
  %514 = vmatprep.subr.mxu0 0.0
  %515 = vmatpush1.xpose.msra.mxu0 0.0
  %516 = vmatprep.subr.mxu0 0.0
  %517 = vmatpush1.xpose.msra.mxu0 0.0
  %518 = vmatprep.subr.mxu0 0.0
  %519 = vmatpush1.xpose.msra.mxu0 0.0
  %520 = vmatprep.subr.mxu0 0.0
  %521 = vmatpush1.xpose.msra.mxu0 0.0
  %522 = vmatprep.subr.mxu0 0.0
  %523 = vmatpush1.xpose.msra.mxu0 0.0
  %524 = vmatprep.subr.mxu0 0.0
  %525 = vmatpush1.xpose.msra.mxu0 0.0
  %526 = vmatprep.subr.mxu0 0.0
  %527 = vmatpush1.xpose.msra.mxu0 0.0
  %528 = vmatprep.subr.mxu0 0.0
  %529 = vmatpush1.xpose.msra.mxu0 0.0
  %530 = vmatprep.subr.mxu0 0.0
  %531 = vmatpush1.xpose.msra.mxu0 0.0
  %532 = vmatprep.subr.mxu0 0.0
  %533 = vmatpush1.xpose.msra.mxu0 0.0
  %534 = vmatprep.subr.mxu0 0.0
  %535 = vmatpush1.xpose.msra.mxu0 0.0
  %536 = vmatprep.subr.mxu0 0.0
  %537 = vmatpush1.xpose.msra.mxu0 0.0
  %538 = vmatprep.subr.mxu0 0.0
  %539 = vmatpush1.xpose.msra.mxu0 0.0
  %540 = vmatprep.subr.mxu0 0.0
  %541 = vmatpush1.xpose.msra.mxu0 0.0
  %542 = vmatprep.subr.mxu0 0.0
  %543 = vmatpush1.xpose.msra.mxu0 0.0
  %544 = vmatprep.subr.mxu0 0.0
  %545 = vmatpush1.xpose.msra.mxu0 0.0
  %546 = vmatprep.subr.mxu0 0.0
  %547 = vmatpush1.xpose.msra.mxu0 0.0
  %548 = vmatprep.subr.mxu0 0.0
  %549 = vmatpush1.xpose.msra.mxu0 0.0
  %550 = vmatprep.mubr.f32.mxu0 0.0
  %551 = vmatmul.mubr.f32.gmra.mrb[0].mxu0 %v436
  %v552 = vpop.f32.mrb[0].mxu0
  %v553 = vadd.f32 0.0, %v552
  %v554 = vpop.f32.mrb[0].mxu0
  %555 = vmatprep.mubr.f32.mxu0 0.0
  %556 = vmatmul.mubr.f32.gmra.mrb[0].mxu0 %v439
  %v557 = vpop.f32.mrb[0].mxu0
  %v558 = vadd.f32 0.0, %v557
  %v559 = vpop.f32.mrb[0].mxu0
  %560 = vmatprep.mubr.f32.mxu0 0.0
  %561 = vmatmul.mubr.f32.gmra.mrb[0].mxu0 %v442
  %v562 = vpop.f32.mrb[0].mxu0
  %v563 = vadd.f32 0.0, %v562
  %v564 = vpop.f32.mrb[0].mxu0
  %565 = vmatprep.mubr.f32.mxu0 0.0
  %566 = vmatmul.mubr.f32.gmra.mrb[0].mxu0 %v445
  %v567 = vpop.f32.mrb[0].mxu0
  %v568 = vadd.f32 0.0, %v567
  %v569 = vpop.f32.mrb[0].mxu0
  %570 = vmatprep.mubr.f32.mxu0 0.0
  %571 = vmatmul.mubr.f32.gmra.mrb[0].mxu0 %v448
  %v572 = vpop.f32.mrb[0].mxu0
  %v573 = vadd.f32 0.0, %v572
  %v574 = vpop.f32.mrb[0].mxu0
  %575 = vmatprep.mubr.f32.mxu0 0.0
  %576 = vmatmul.mubr.f32.gmra.mrb[0].mxu0 %v451
  %v577 = vpop.f32.mrb[0].mxu0
  %v578 = vadd.f32 0.0, %v577
  %v579 = vpop.f32.mrb[0].mxu0
  %580 = vmatprep.mubr.f32.mxu0 0.0
  %581 = vmatmul.mubr.f32.gmra.mrb[0].mxu0 %v454
  %v582 = vpop.f32.mrb[0].mxu0
  %v583 = vadd.f32 0.0, %v582
  %v584 = vpop.f32.mrb[0].mxu0
  %585 = vmatprep.mubr.f32.mxu0 0.0
  %586 = vmatmul.mubr.f32.gmra.mrb[0].mxu0 %v457
  %v587 = vpop.f32.mrb[0].mxu0
  %v588 = vadd.f32 0.0, %v587
  %v589 = vpop.f32.mrb[0].mxu0
  %590 = vmatprep.mubr.f32.mxu0 0.0
  %591 = vmatmul.mubr.f32.gmra.mrb[0].mxu0 %v460
  %v592 = vpop.f32.mrb[0].mxu0
  %v593 = vadd.f32 0.0, %v592
  %v594 = vpop.f32.mrb[0].mxu0
  %595 = vmatprep.mubr.f32.mxu0 0.0
  %596 = vmatmul.mubr.f32.gmra.mrb[0].mxu0 %v463
  %v597 = vpop.f32.mrb[0].mxu0
  %v598 = vadd.f32 0.0, %v597
  %v599 = vpop.f32.mrb[0].mxu0
  %600 = vmatprep.mubr.f32.mxu0 0.0
  %601 = vmatmul.mubr.f32.gmra.mrb[0].mxu0 %v466
  %v602 = vpop.f32.mrb[0].mxu0
  %v603 = vadd.f32 0.0, %v602
  %v604 = vpop.f32.mrb[0].mxu0
  %605 = vmatprep.mubr.f32.mxu0 0.0
  %606 = vmatmul.mubr.f32.gmra.mrb[0].mxu0 %v469
  %v607 = vpop.f32.mrb[0].mxu0
  %v608 = vadd.f32 0.0, %v607
  %v609 = vpop.f32.mrb[0].mxu0
  %610 = vmatprep.mubr.f32.mxu0 0.0
  %611 = vmatmul.mubr.f32.gmra.mrb[0].mxu0 %v472
  %v612 = vpop.f32.mrb[0].mxu0
  %v613 = vadd.f32 0.0, %v612
  %v614 = vpop.f32.mrb[0].mxu0
  %615 = vmatprep.mubr.f32.mxu0 0.0
  %616 = vmatmul.mubr.f32.gmra.mrb[0].mxu0 %v475
  %v617 = vpop.f32.mrb[0].mxu0
  %v618 = vadd.f32 0.0, %v617
  %v619 = vpop.f32.mrb[0].mxu0
  %620 = vmatprep.mubr.f32.mxu0 0.0
  %621 = vmatmul.mubr.f32.gmra.mrb[0].mxu0 %v478
  %v622 = vpop.f32.mrb[0].mxu0
  %v623 = vadd.f32 0.0, %v622
  %v624 = vpop.f32.mrb[0].mxu0
  %625 = vmatprep.mubr.f32.mxu0 0.0
  %626 = vmatmul.mubr.f32.gmra.mrb[0].mxu0 %v481
  %v627 = vpop.f32.mrb[0].mxu0
  %v628 = vadd.f32 0.0, %v627
  %v629 = vpop.f32.mrb[0].mxu0
  %630 = vdwg.mxu0
  %631 = vst.msk [vmem:[%s5] sm:$0xff] %vm38, %v553
  %632 = vst.msk [vmem:[%s5 + $0x8] sm:$0xff] %vm38, %v558
  %633 = vst.msk [vmem:[%s5 + $0x10] sm:$0xff] %vm38, %v563
  %634 = vst.msk [vmem:[%s5 + $0x18] sm:$0xff] %vm38, %v568
  %635 = vst.msk [vmem:[%s5 + $0x20] sm:$0xff] %vm38, %v573
  %636 = vst.msk [vmem:[%s5 + $0x28] sm:$0xff] %vm38, %v578
  %637 = vst.msk [vmem:[%s5 + $0x30] sm:$0xff] %vm38, %v583
  %638 = vst.msk [vmem:[%s5 + $0x38] sm:$0xff] %vm38, %v588
  %639 = vst.msk [vmem:[%s5 + $0x40] sm:$0xff] %vm38, %v593
  %640 = vst.msk [vmem:[%s5 + $0x48] sm:$0xff] %vm38, %v598
  %641 = vst.msk [vmem:[%s5 + $0x50] sm:$0xff] %vm38, %v603
  %642 = vst.msk [vmem:[%s5 + $0x58] sm:$0xff] %vm38, %v608
  %643 = vst.msk [vmem:[%s5 + $0x60] sm:$0xff] %vm38, %v613
  %644 = vst.msk [vmem:[%s5 + $0x68] sm:$0xff] %vm38, %v618
  %645 = vst.msk [vmem:[%s5 + $0x70] sm:$0xff] %vm38, %v623
  %646 = vst.msk [vmem:[%s5 + $0x78] sm:$0xff] %vm38, %v628
  // Predicated region
  $region22: #{mlp_forward.1} parent=0 // pred_check
    _
  $region23: #{mlp_forward.1} parent=0 // pred_check_branch
    %648 = sbr.rel (0) target = $region25
  $region24: #{mlp_forward.1} parent=0 // pred_region
    _
  $region25: #{mlp_forward.1} parent=0 // pred_fallthru
    _
  // Predicated region
  $region26: #{mlp_forward.1} parent=0 // pred_check
    _
  $region27: #{mlp_forward.1} parent=0 // pred_check_branch
    %650 = sbr.rel (0) target = $region29
  $region28: #{mlp_forward.1} parent=0 // pred_region
    _
  $region29: #{mlp_forward.1} parent=0 // pred_fallthru
    _

</llo_original>
